<compile_context>
chip_gen: v6e
topology: v6e:2x2x1
jax: 0.10.0
libtpu: 0.0.40
codegen_flags: <defaults>
</compile_context>

<pallas_src>
import functools

import jax
import jax.numpy as jnp
import numpy as np
from jax.experimental import pallas as pl
from jax.experimental.pallas import tpu as pltpu


def _patch_expand_kernel(x_ref, w_ref, o_ref, *, dim_scale):
    """x_ref: (tb, W, C); w_ref: (s, C, s*oc); o_ref: (tb, s, W, s*oc)."""
    tb, W, C = x_ref.shape
    x2 = x_ref[...].reshape(tb * W, C)          # free reshape: merge leading dims
    for p1 in range(dim_scale):                 # static unroll; dim_scale is tiny (2/4)
        # Per-p1 weight slab keeps each GEMM result exactly the contiguous
        # (tb, W, s*oc) chunk the output layout needs (no lane slicing).
        y = jnp.dot(x2, w_ref[p1], preferred_element_type=jnp.float32)
        o_ref[:, p1, :, :] = y.reshape(tb, W, -1).astype(o_ref.dtype)


def _choose_row_block(bh, w, c, s, oc, itemsize,
                      vmem_budget_bytes=24 * 1024 * 1024):
    """Largest divisor tb of bh whose double-buffered x/out blocks (plus the
    resident, double-buffered weight) fit the VMEM budget; prefer >= 2 grid
    steps so the 'parallel' axis can be sharded across v7x's two cores."""
    weight_bytes = 2 * c * s * s * oc * itemsize              # 2 pipeline buffers
    avail = max(vmem_budget_bytes - weight_bytes, 2 * 1024 * 1024)
    per_row = 2 * w * (c + s * s * oc) * itemsize             # dbl-buffered x + out
    max_tb = max(1, avail // per_row)
    divs = [d for d in range(1, bh + 1) if bh % d == 0 and d <= max_tb] or [1]
    multi = [d for d in divs if bh // d >= 2]
    return max(multi) if multi else max(divs)


def patch_expand(x, expand_w, out_channels, dim_scale):
    """x: (B, H, W, C); expand_w: (C, out_channels * dim_scale**2), i.e. the
    transpose of PyTorch's nn.Linear weight. Returns (B, H*s, W*s, out_channels)."""
    B, H, W, C = x.shape
    s, oc = dim_scale, out_channels
    assert expand_w.shape == (C, oc * s * s), expand_w.shape

    # Expand-GEMM output column index is (p1*s + p2)*oc + c; regroup so each
    # p1 slice is a contiguous (C, s*oc) slab: (C, s*s*oc) -> (s, C, s*oc).
    w_p1 = expand_w.reshape(C, s, s * oc).transpose(1, 0, 2)

    bh = B * H
    x3 = x.reshape(bh, W, C)                    # free reshape (row-major)
    itemsize = int(np.dtype(x.dtype).itemsize)
    tb = _choose_row_block(bh, W, C, s, oc, itemsize)
    grid = (bh // tb,)

    flops = 2 * bh * W * C * (s * s * oc)
    bytes_accessed = (bh * W * C + C * s * s * oc + bh * W * s * s * oc) * itemsize

    out = pl.pallas_call(
        functools.partial(_patch_expand_kernel, dim_scale=s),
        out_shape=jax.ShapeDtypeStruct((bh, s, W, s * oc), x.dtype),
        grid=grid,
        in_specs=[
            pl.BlockSpec((tb, W, C), lambda i: (i, 0, 0)),
            # Constant block index -> weight stays resident across grid steps.
            pl.BlockSpec((s, C, s * oc), lambda i: (0, 0, 0)),
        ],
        out_specs=pl.BlockSpec((tb, s, W, s * oc), lambda i: (i, 0, 0, 0)),
        compiler_params=pltpu.CompilerParams(
            dimension_semantics=("parallel",),
            vmem_limit_bytes=32 * 1024 * 1024),
        cost_estimate=pl.CostEstimate(
            flops=flops, transcendentals=0, bytes_accessed=bytes_accessed),
    )(x3, w_p1)

    # (bh, s, W, s*oc) is contiguously identical to (B, H*s, W*s, oc):
    #   flat index (((b*H+h)*s+p1)*W + w)*s*oc + p2*oc + c
    # == (b*(H*s) + h*s + p1)*(W*s)*oc + (w*s + p2)*oc + c
    return out.reshape(B, H * s, W * s, oc)


def patch_expand_reference(x, expand_w, out_channels, dim_scale):
    """Pure-JAX reference mirroring the PyTorch forward."""
    B, H, W, C = x.shape
    s, oc = dim_scale, out_channels
    y = jnp.dot(x.reshape(-1, C), expand_w,
                precision=jax.lax.Precision.HIGHEST)
    y = y.reshape(B, H, W, s, s, oc).transpose(0, 1, 3, 2, 4, 5)
    return y.reshape(B, H * s, W * s, oc).astype(x.dtype)


if __name__ == "__main__":
    # PatchExpand(in_channels=64, out_channels=32, dim_scale=2) at small shapes.
    B, H, W, C = 2, 16, 16, 64
    dim_scale = 2
    out_channels = 32

    key = jax.random.PRNGKey(0)
    kx, kw = jax.random.split(key)
    x = jax.random.normal(kx, (B, H, W, C), jnp.float32)
    # PyTorch stores the Linear weight as (out_features, in_features); the
    # kernel consumes its transpose (in, out).
    expand_w = (jax.random.normal(
        kw, (C, out_channels * dim_scale ** 2), jnp.float32) / np.sqrt(C))

    fwd = jax.jit(functools.partial(
        patch_expand, out_channels=out_channels, dim_scale=dim_scale))
    out = jax.block_until_ready(fwd(x, expand_w))

    assert out.shape == (B, H * dim_scale, W * dim_scale, out_channels), out.shape
    ref = patch_expand_reference(x, expand_w, out_channels, dim_scale)
    np.testing.assert_allclose(np.asarray(out), np.asarray(ref),
                               rtol=2e-2, atol=2e-2)
    assert bool(jnp.all(jnp.isfinite(out)))
    print("KERNEL_OK")
</pallas_src>

<mosaic_0001>
module attributes {stable_mosaic.version = 11 : i64} {
  func.func @_patch_expand_kernel(%arg0: i32, %arg1: memref<16x16x64xf32, #tpu.memory_space<vmem>>, %arg2: memref<2x64x64xf32, #tpu.memory_space<vmem>>, %arg3: memref<16x2x16x64xf32, #tpu.memory_space<vmem>>) attributes {dimension_semantics = [#tpu.dimension_semantics<parallel>], iteration_bounds = array<i64: 2>, scalar_prefetch = 0 : i64, scratch_operands = 0 : i64, tpu.core_type = #tpu.core_type<tc>, window_params = [{transform_indices = @transform_0, window_bounds = array<i64: 16, 16, 64>}, {pipeline_mode = #tpu.pipeline_mode<synchronous>, transform_indices = @transform_1, window_bounds = array<i64: 2, 64, 64>}, {transform_indices = @transform_2, window_bounds = array<i64: 16, 2, 16, 64>}]} {
    %c0 = arith.constant 0 : index
    %c0_0 = arith.constant 0 : index
    %c0_1 = arith.constant 0 : index
    %0 = vector.load %arg1[%c0, %c0_0, %c0_1] : memref<16x16x64xf32, #tpu.memory_space<vmem>>, vector<16x16x64xf32>
    %1 = vector.shape_cast %0 : vector<16x16x64xf32> to vector<256x64xf32>
    %c0_2 = arith.constant 0 : index
    %c0_3 = arith.constant 0 : index
    %c0_4 = arith.constant 0 : index
    %2 = vector.load %arg2[%c0_2, %c0_3, %c0_4] : memref<2x64x64xf32, #tpu.memory_space<vmem>>, vector<1x64x64xf32>
    %3 = vector.shape_cast %2 : vector<1x64x64xf32> to vector<64x64xf32>
    %cst = arith.constant dense<0.000000e+00> : vector<256x64xf32>
    %4 = tpu.matmul %1, %3, %cst {dimension_numbers = #tpu.dot_dimension_numbers<[1], [0], [0], [1], [0, 0, 1, 1], [], []>} : vector<256x64xf32>, vector<64x64xf32>, vector<256x64xf32> -> vector<256x64xf32>
    %5 = vector.shape_cast %4 : vector<256x64xf32> to vector<16x16x64xf32>
    %c0_5 = arith.constant 0 : index
    %c0_6 = arith.constant 0 : index
    %c0_7 = arith.constant 0 : index
    %c0_8 = arith.constant 0 : index
    %6 = vector.load %arg3[%c0_5, %c0_6, %c0_7, %c0_8] : memref<16x2x16x64xf32, #tpu.memory_space<vmem>>, vector<16x1x16x64xf32>
    %7 = vector.shape_cast %6 : vector<16x1x16x64xf32> to vector<16x16x64xf32>
    %8 = vector.shape_cast %5 : vector<16x16x64xf32> to vector<16x1x16x64xf32>
    tpu.vector_store %arg3[%c0_5, %c0_6, %c0_7, %c0_8], %8 {strides = array<i32>} : memref<16x2x16x64xf32, #tpu.memory_space<vmem>>, vector<16x1x16x64xf32>,
    %c1 = arith.constant 1 : index
    %c0_9 = arith.constant 0 : index
    %c0_10 = arith.constant 0 : index
    %9 = vector.load %arg2[%c1, %c0_9, %c0_10] : memref<2x64x64xf32, #tpu.memory_space<vmem>>, vector<1x64x64xf32>
    %10 = vector.shape_cast %9 : vector<1x64x64xf32> to vector<64x64xf32>
    %cst_11 = arith.constant dense<0.000000e+00> : vector<256x64xf32>
    %11 = tpu.matmul %1, %10, %cst_11 {dimension_numbers = #tpu.dot_dimension_numbers<[1], [0], [0], [1], [0, 0, 1, 1], [], []>} : vector<256x64xf32>, vector<64x64xf32>, vector<256x64xf32> -> vector<256x64xf32>
    %12 = vector.shape_cast %11 : vector<256x64xf32> to vector<16x16x64xf32>
    %c0_12 = arith.constant 0 : index
    %c1_13 = arith.constant 1 : index
    %c0_14 = arith.constant 0 : index
    %c0_15 = arith.constant 0 : index
    %13 = vector.load %arg3[%c0_12, %c1_13, %c0_14, %c0_15] : memref<16x2x16x64xf32, #tpu.memory_space<vmem>>, vector<16x1x16x64xf32>
    %14 = vector.shape_cast %13 : vector<16x1x16x64xf32> to vector<16x16x64xf32>
    %15 = vector.shape_cast %12 : vector<16x16x64xf32> to vector<16x1x16x64xf32>
    tpu.vector_store %arg3[%c0_12, %c1_13, %c0_14, %c0_15], %15 {strides = array<i32>} : memref<16x2x16x64xf32, #tpu.memory_space<vmem>>, vector<16x1x16x64xf32>,
    return
  }
  func.func @transform_0(%arg0: i32) -> (i32, i32, i32) {
    %c0_i32 = arith.constant 0 : i32
    %c0_i32_0 = arith.constant 0 : i32
    %c0_i32_1 = arith.constant 0 : i32
    return %arg0, %c0_i32, %c0_i32_0 : i32, i32, i32
  }
  func.func @transform_1(%arg0: i32) -> (i32, i32, i32) {
    %c0_i32 = arith.constant 0 : i32
    %c0_i32_0 = arith.constant 0 : i32
    %c0_i32_1 = arith.constant 0 : i32
    %c0_i32_2 = arith.constant 0 : i32
    return %c0_i32, %c0_i32_0, %c0_i32_1 : i32, i32, i32
  }
  func.func @transform_2(%arg0: i32) -> (i32, i32, i32, i32) {
    %c0_i32 = arith.constant 0 : i32
    %c0_i32_0 = arith.constant 0 : i32
    %c0_i32_1 = arith.constant 0 : i32
    %c0_i32_2 = arith.constant 0 : i32
    return %arg0, %c0_i32, %c0_i32_0, %c0_i32_1 : i32, i32, i32, i32
  }
}

</mosaic_0001>

<llo_original>
// kernel: patch_expand.1
$region0: #{patch_expand.1}
  #allocation0 [shape = 'u32[]', space=smem, size = 0x4, offset = 0x4, fixed_abs, tag = 'smem constant byte address 0x4 - core index']
  #allocation1 [shape = 'u32[144,128]{1,0:T(1,128)}', space=vmem, size = 0x12000, scoped, tag = 'internal scratch']
  %s0 = inlined_call_operand.hbm [shape: f32[32,16,64], index: 0, kind: input, shape index: {}]
  %s1 = inlined_call_operand.vmem [shape: f32[2,64,64], index: 1, kind: input, shape index: {}]
  %s2 = inlined_call_operand.vmem [shape: f32[32,2,16,64], index: 2, kind: output, shape index: {}]
  %s3 = sld [smem:[#allocation0]]
  $region45: #{patch_expand.1} parent=0
    _
  %s5 = ssub.s32 1, %s3
  %s6 = scalar_select 0, %s5, %s3
  $region1: #{patch_expand.1} parent=0
    #allocation2 [shape = 'u8[262144]{0}', space=vmem, size = 0x40000, scoped, tag = 'input window, operand 0']
    #allocation3 [shape = 's32[2]{0}', space=sflag, size = 0x8, scoped, tag = 'scoped memory for patch_expand.1']
    %7 = vsyncpa [#allocation3], 0
    %s8 = scalar_lea.sflag [#allocation3], 1
    %9 = vsyncpa %s8, 0
    loop: start=0, step=1, limit=4
    $region2: #{patch_expand.1} parent=1 // loop_pre_header
      _
    $region3: #{patch_expand.1} parent=1 // loop_header
      %s11 = sphi 0, %s15
      %p12 = scmp.ge.s32.totalorder %s11, 4
      %s21 = sphi 0, %s23
      %s24 = sphi 0, %s21
      %s25 = sphi 0, %s24
      %s41 = sphi 0, %s25
      %s45 = sphi 0, %s45
      %s47 = sphi 0, %s45
      %s48 = sphi 0, %s47
      %s62 = sphi 0, %s48
      %s68 = sphi 0, %s70
      %s71 = sphi 0, %s68
      %s72 = sphi 0, %s71
      %s88 = sphi 0, %s72
    $region4: #{patch_expand.1} parent=1 // loop_header_branch
      %14 = sbr.rel (%p12) target = $region8
    $region5: #{patch_expand.1} parent=1 // loop_body
      %s16 = ssub.s32 %s11, 1
      %s17 = ssub.s32 %s11, 2
      %s18 = sadd.s32 %s11, 1
      %s19 = ssub.s32 %s11, %s18
      %p20 = scmp.eq.s32.totalorder %s19, 0
      %s22 = sadd.s32 %s21, 1
      %s23 = scalar_select %p20, %s21, %s22
      %p26 = pneg %p20
      %p27 = scmp.eq.s32.totalorder %s11, 1
      %p28 = por %p26, %p27
      %p29 = scmp.ne.s32.totalorder %s21, %s24
      %p30 = scmp.eq.s32.totalorder %s11, 0
      %p31 = por %p29, %p30
      %p32 = scmp.ne.s32.totalorder %s21, %s24
      %p33 = scmp.eq.s32.totalorder %s16, 1
      %p34 = por %p32, %p33
      %p35 = scmp.ne.s32.totalorder %s24, %s25
      %p36 = scmp.eq.s32.totalorder %s16, 0
      %p37 = por %p35, %p36
      %p38 = scmp.ne.s32.totalorder %s24, %s25
      %p39 = scmp.eq.s32.totalorder %s17, 1
      %p40 = por %p38, %p39
      %p42 = scmp.ne.s32.totalorder %s25, %s41
      %p43 = scmp.eq.s32.totalorder %s17, 0
      %p44 = por %p42, %p43
      %s46 = sadd.s32 %s45, 1
      %p49 = scmp.eq.s32.totalorder %s11, 1
      %p50 = scmp.ne.s32.totalorder %s45, %s47
      %p51 = scmp.eq.s32.totalorder %s11, 0
      %p52 = por %p50, %p51
      %p53 = scmp.ne.s32.totalorder %s45, %s47
      %p54 = scmp.eq.s32.totalorder %s16, 1
      %p55 = por %p53, %p54
      %p56 = scmp.ne.s32.totalorder %s47, %s48
      %p57 = scmp.eq.s32.totalorder %s16, 0
      %p58 = por %p56, %p57
      %p59 = scmp.ne.s32.totalorder %s47, %s48
      %p60 = scmp.eq.s32.totalorder %s17, 1
      %p61 = por %p59, %p60
      %p63 = scmp.ne.s32.totalorder %s48, %s62
      %p64 = scmp.eq.s32.totalorder %s17, 0
      %p65 = por %p63, %p64
      %s66 = ssub.s32 %s11, %s18
      %p67 = scmp.eq.s32.totalorder %s66, 0
      %s69 = sadd.s32 %s68, 1
      %s70 = scalar_select %p67, %s68, %s69
      %p73 = pneg %p67
      %p74 = scmp.eq.s32.totalorder %s11, 1
      %p75 = por %p73, %p74
      %p76 = scmp.ne.s32.totalorder %s68, %s71
      %p77 = scmp.eq.s32.totalorder %s11, 0
      %p78 = por %p76, %p77
      %p79 = scmp.ne.s32.totalorder %s68, %s71
      %p80 = scmp.eq.s32.totalorder %s16, 1
      %p81 = por %p79, %p80
      %p82 = scmp.ne.s32.totalorder %s71, %s72
      %p83 = scmp.eq.s32.totalorder %s16, 0
      %p84 = por %p82, %p83
      %p85 = scmp.ne.s32.totalorder %s71, %s72
      %p86 = scmp.eq.s32.totalorder %s17, 1
      %p87 = por %p85, %p86
      %p89 = scmp.ne.s32.totalorder %s72, %s88
      %p90 = scmp.eq.s32.totalorder %s17, 0
      %p91 = por %p89, %p90
      %p92 = scmp.le.s32.totalorder 1, %s11
      %p93 = scmp.lt.s32.totalorder %s11, 3
      %p94 = pnand %p92, %p93
      %p95 = pneg %p94
      // Predicated region
      $region9: #{patch_expand.1} parent=5 // pred_check
        _
      $region10: #{patch_expand.1} parent=5 // pred_check_branch
        %97 = sbr.rel (%p94) target = $region12
      $region11: #{patch_expand.1} parent=5 // pred_region
        %s98 = ssub.s32 %s11, 1
        // Predicated region
        $region13: #{patch_expand.1} parent=11 // pred_check
          %p99 = pneg %p58
        $region14: #{patch_expand.1} parent=11 // pred_check_branch
          %101 = sbr.rel (%p99) target = $region16
        $region15: #{patch_expand.1} parent=11 // pred_region
          _
        $region16: #{patch_expand.1} parent=11 // pred_fallthru
          _
      $region12: #{patch_expand.1} parent=5 // pred_fallthru
        _
      %p102 = scmp.lt.s32.totalorder %s11, 2
      // Predicated region
      $region17: #{patch_expand.1} parent=5 // pred_check
        %p103 = pneg %p102
      $region18: #{patch_expand.1} parent=5 // pred_check_branch
        %105 = sbr.rel (%p103) target = $region20
      $region19: #{patch_expand.1} parent=5 // pred_region
        // Predicated region
        $region21: #{patch_expand.1} parent=19 // pred_check
          %p106 = pneg %p31
        $region22: #{patch_expand.1} parent=19 // pred_check_branch
          %108 = sbr.rel (%p106) target = $region24
        $region23: #{patch_expand.1} parent=19 // pred_region
          %s109 = sand.u32 %s21, 1
          %s110 = scalar_lea.sflag [#allocation3], %s109
          %s111 = sand.u32 %s21, 1
          %s112 = smul.addr %s111, 256
          %s113 = scalar_lea.vmem [#allocation2], %s112
          %s114 = smul.u32 16, %s11
          %s116 = ssub.s32 4096, 4096
          %117 = vsyncadd %s110, %s116
          %s118 = smul.addr %s114, 2
          %s119 = smul.addr %s118, 128
          %s120 = scalar_lea.hbm %s0, %s119
          %s121 = sshll.u32 %s113, 4
          %s122 = int_to_ptr.vmem [resolvable:$true] %s121
          %127 = dma.hbm_to_vmem [thread:$0]  %s120, 4096, %s122, %s110, 128, 128, 8
        $region24: #{patch_expand.1} parent=19 // pred_fallthru
          _
      $region20: #{patch_expand.1} parent=5 // pred_fallthru
        _
      %p128 = scmp.le.s32.totalorder 1, %s11
      %p129 = scmp.lt.s32.totalorder %s11, 3
      %p130 = pnand %p128, %p129
      %p131 = pneg %p130
      // Predicated region
      $region25: #{patch_expand.1} parent=5 // pred_check
        _
      $region26: #{patch_expand.1} parent=5 // pred_check_branch
        %133 = sbr.rel (%p130) target = $region28
      $region27: #{patch_expand.1} parent=5 // pred_region
        %s134 = ssub.s32 %s11, 1
        %s135 = sand.u32 %s24, 1
        %s136 = scalar_lea.sflag [#allocation3], %s135
        %s137 = sand.u32 %s24, 1
        %s138 = smul.addr %s137, 256
        %s139 = scalar_lea.vmem [#allocation2], %s138
        // Predicated region
        $region29: #{patch_expand.1} parent=27 // pred_check
          %p140 = pneg %p37
        $region30: #{patch_expand.1} parent=27 // pred_check_branch
          %142 = sbr.rel (%p140) target = $region32
        $region31: #{patch_expand.1} parent=27 // pred_region
          %143 = dma.done %s136, 4096
        $region32: #{patch_expand.1} parent=27 // pred_fallthru
          _
        %s144 = sand.u32 %s24, 1
        %s145 = scalar_lea.sflag [#allocation3], %s144
        %s146 = sand.u32 %s24, 1
        %s147 = smul.addr %s146, 256
        %s148 = scalar_lea.vmem [#allocation2], %s147
        %p149 = pneg %p37
        %p150 = pneg %p34
        %p151 = pneg %p58
        %p152 = pneg %p55
        %p153 = pneg %p84
        %p154 = pneg %p81
        %s155 = smul.u32 16, %s16
        %p156 = scmp.lt.s32.totalorder %s155, 31
        %s157 = scalar_select %p156, %s155, 31
        %s158 = smul.addr %s157, 4
        %s159 = smul.addr %s158, 8
        %s160 = scalar_lea.vmem %s2, %s159
        %s161 = smul.u32 16, %s16
        %s162 = smul.u32 16, %s16
        %p163 = scmp.lt.s32.totalorder %s162, 31
        %s164 = scalar_select %p163, %s162, 31
        %s165 = smul.addr %s164, 4
        %s166 = smul.addr %s165, 8
        %s167 = scalar_lea.vmem %s2, %s166
        %s168 = smul.u32 16, %s16
        %v169 = vld [vmem:[%s139] sm:$0xff]
        %v170 = vld [vmem:[%s139 + $0x8] sm:$0xff]
        %v171 = vld [vmem:[%s139 + $0x10] sm:$0xff]
        %v172 = vld [vmem:[%s139 + $0x18] sm:$0xff]
        %v173 = vld [vmem:[%s139 + $0x20] sm:$0xff]
        %v174 = vld [vmem:[%s139 + $0x28] sm:$0xff]
        %v175 = vld [vmem:[%s139 + $0x30] sm:$0xff]
        %v176 = vld [vmem:[%s139 + $0x38] sm:$0xff]
        %v177 = vld [vmem:[%s139 + $0x40] sm:$0xff]
        %v178 = vld [vmem:[%s139 + $0x48] sm:$0xff]
        %v179 = vld [vmem:[%s139 + $0x50] sm:$0xff]
        %v180 = vld [vmem:[%s139 + $0x58] sm:$0xff]
        %v181 = vld [vmem:[%s139 + $0x60] sm:$0xff]
        %v182 = vld [vmem:[%s139 + $0x68] sm:$0xff]
        %v183 = vld [vmem:[%s139 + $0x70] sm:$0xff]
        %v184 = vld [vmem:[%s139 + $0x78] sm:$0xff]
        %v185 = vld [vmem:[%s139 + $0x80] sm:$0xff]
        %v186 = vld [vmem:[%s139 + $0x88] sm:$0xff]
        %v187 = vld [vmem:[%s139 + $0x90] sm:$0xff]
        %v188 = vld [vmem:[%s139 + $0x98] sm:$0xff]
        %v189 = vld [vmem:[%s139 + $0xa0] sm:$0xff]
        %v190 = vld [vmem:[%s139 + $0xa8] sm:$0xff]
        %v191 = vld [vmem:[%s139 + $0xb0] sm:$0xff]
        %v192 = vld [vmem:[%s139 + $0xb8] sm:$0xff]
        %v193 = vld [vmem:[%s139 + $0xc0] sm:$0xff]
        %v194 = vld [vmem:[%s139 + $0xc8] sm:$0xff]
        %v195 = vld [vmem:[%s139 + $0xd0] sm:$0xff]
        %v196 = vld [vmem:[%s139 + $0xd8] sm:$0xff]
        %v197 = vld [vmem:[%s139 + $0xe0] sm:$0xff]
        %v198 = vld [vmem:[%s139 + $0xe8] sm:$0xff]
        %v199 = vld [vmem:[%s139 + $0xf0] sm:$0xff]
        %v200 = vld [vmem:[%s139 + $0xf8] sm:$0xff]
        %v201 = vld [vmem:[%s1] sm:$0xff]
        %v202 = vld [vmem:[%s1 + $0x8] sm:$0xff]
        %v203 = vld [vmem:[%s1 + $0x10] sm:$0xff]
        %v204 = vld [vmem:[%s1 + $0x18] sm:$0xff]
        %v205 = vld [vmem:[%s1 + $0x20] sm:$0xff]
        %v206 = vld [vmem:[%s1 + $0x28] sm:$0xff]
        %v207 = vld [vmem:[%s1 + $0x30] sm:$0xff]
        %v208 = vld [vmem:[%s1 + $0x38] sm:$0xff]
        %vm209 = vcmask 523264
        %v211 = vsel %vm209, %v169, 0
        %v214 = vsel %vm209, %v170, 0
        %v217 = vsel %vm209, %v171, 0
        %v220 = vsel %vm209, %v172, 0
        %v223 = vsel %vm209, %v173, 0
        %v226 = vsel %vm209, %v174, 0
        %v229 = vsel %vm209, %v175, 0
        %v232 = vsel %vm209, %v176, 0
        %v235 = vsel %vm209, %v177, 0
        %v238 = vsel %vm209, %v178, 0
        %v241 = vsel %vm209, %v179, 0
        %v244 = vsel %vm209, %v180, 0
        %v247 = vsel %vm209, %v181, 0
        %v250 = vsel %vm209, %v182, 0
        %v253 = vsel %vm209, %v183, 0
        %v256 = vsel %vm209, %v184, 0
        %v259 = vsel %vm209, %v185, 0
        %v262 = vsel %vm209, %v186, 0
        %v265 = vsel %vm209, %v187, 0
        %v268 = vsel %vm209, %v188, 0
        %v271 = vsel %vm209, %v189, 0
        %v274 = vsel %vm209, %v190, 0
        %v277 = vsel %vm209, %v191, 0
        %v280 = vsel %vm209, %v192, 0
        %v283 = vsel %vm209, %v193, 0
        %v286 = vsel %vm209, %v194, 0
        %v289 = vsel %vm209, %v195, 0
        %v292 = vsel %vm209, %v196, 0
        %v295 = vsel %vm209, %v197, 0
        %v298 = vsel %vm209, %v198, 0
        %v301 = vsel %vm209, %v199, 0
        %v304 = vsel %vm209, %v200, 0
        %306 = vmatprep.subr.mxu0 0.0
        %307 = vmatpush1.msra.mxu0 0.0
        %308 = vmatprep.subr.mxu0 0.0
        %309 = vmatpush1.msra.mxu0 0.0
        %310 = vmatprep.subr.mxu0 0.0
        %311 = vmatpush1.msra.mxu0 0.0
        %312 = vmatprep.subr.mxu0 0.0
        %313 = vmatpush1.msra.mxu0 0.0
        %314 = vmatprep.subr.mxu0 0.0
        %315 = vmatpush1.msra.mxu0 0.0
        %316 = vmatprep.subr.mxu0 0.0
        %317 = vmatpush1.msra.mxu0 0.0
        %318 = vmatprep.subr.mxu0 0.0
        %319 = vmatpush1.msra.mxu0 0.0
        %320 = vmatprep.subr.mxu0 0.0
        %321 = vmatpush1.msra.mxu0 0.0
        %322 = vmatprep.subr.mxu0 0.0
        %323 = vmatpush1.msra.mxu0 %v208
        %324 = vmatprep.subr.mxu0 0.0
        %325 = vmatpush1.msra.mxu0 %v207
        %326 = vmatprep.subr.mxu0 0.0
        %327 = vmatpush1.msra.mxu0 %v206
        %328 = vmatprep.subr.mxu0 0.0
        %329 = vmatpush1.msra.mxu0 %v205
        %330 = vmatprep.subr.mxu0 0.0
        %331 = vmatpush1.msra.mxu0 %v204
        %332 = vmatprep.subr.mxu0 0.0
        %333 = vmatpush1.msra.mxu0 %v203
        %334 = vmatprep.subr.mxu0 0.0
        %335 = vmatpush1.msra.mxu0 %v202
        %336 = vmatprep.subr.mxu0 0.0
        %337 = vmatpush1.msra.mxu0 %v201
        %338 = vmatprep.subr.mxu0 0.0
        %339 = vmatpush2.msra.mxu0 0.0
        %340 = vmatprep.subr.mxu0 0.0
        %341 = vmatpush2.msra.mxu0 0.0
        %342 = vmatprep.subr.mxu0 0.0
        %343 = vmatpush2.msra.mxu0 0.0
        %344 = vmatprep.subr.mxu0 0.0
        %345 = vmatpush2.msra.mxu0 0.0
        %346 = vmatprep.subr.mxu0 0.0
        %347 = vmatpush2.msra.mxu0 0.0
        %348 = vmatprep.subr.mxu0 0.0
        %349 = vmatpush2.msra.mxu0 0.0
        %350 = vmatprep.subr.mxu0 0.0
        %351 = vmatpush2.msra.mxu0 0.0
        %352 = vmatprep.subr.mxu0 0.0
        %353 = vmatpush2.msra.mxu0 0.0
        %354 = vmatprep.subr.mxu0 0.0
        %355 = vmatpush2.msra.mxu0 0.0
        %356 = vmatprep.subr.mxu0 0.0
        %357 = vmatpush2.msra.mxu0 0.0
        %358 = vmatprep.subr.mxu0 0.0
        %359 = vmatpush2.msra.mxu0 0.0
        %360 = vmatprep.subr.mxu0 0.0
        %361 = vmatpush2.msra.mxu0 0.0
        %362 = vmatprep.subr.mxu0 0.0
        %363 = vmatpush2.msra.mxu0 0.0
        %364 = vmatprep.subr.mxu0 0.0
        %365 = vmatpush2.msra.mxu0 0.0
        %366 = vmatprep.subr.mxu0 0.0
        %367 = vmatpush2.msra.mxu0 0.0
        %368 = vmatprep.subr.mxu0 0.0
        %369 = vmatpush2.msra.mxu0 0.0
        %370 = vmatprep.mubr.f32.mxu0 0.0
        %371 = vmatmul.mubr.f32.gmra.mxu0 %v211
        %v372 = vpop.f32.mrf.mxu0
        %v373 = vadd.f32 0.0, %v372
        %v374 = vpop.f32.mrf.mxu0
        %375 = vmatprep.mubr.f32.mxu0 0.0
        %376 = vmatmul.mubr.f32.gmra.mxu0 %v214
        %v377 = vpop.f32.mrf.mxu0
        %v378 = vadd.f32 0.0, %v377
        %v379 = vpop.f32.mrf.mxu0
        %380 = vmatprep.mubr.f32.mxu0 0.0
        %381 = vmatmul.mubr.f32.gmra.mxu0 %v217
        %v382 = vpop.f32.mrf.mxu0
        %v383 = vadd.f32 0.0, %v382
        %v384 = vpop.f32.mrf.mxu0
        %385 = vmatprep.mubr.f32.mxu0 0.0
        %386 = vmatmul.mubr.f32.gmra.mxu0 %v220
        %v387 = vpop.f32.mrf.mxu0
        %v388 = vadd.f32 0.0, %v387
        %v389 = vpop.f32.mrf.mxu0
        %390 = vmatprep.mubr.f32.mxu0 0.0
        %391 = vmatmul.mubr.f32.gmra.mxu0 %v223
        %v392 = vpop.f32.mrf.mxu0
        %v393 = vadd.f32 0.0, %v392
        %v394 = vpop.f32.mrf.mxu0
        %395 = vmatprep.mubr.f32.mxu0 0.0
        %396 = vmatmul.mubr.f32.gmra.mxu0 %v226
        %v397 = vpop.f32.mrf.mxu0
        %v398 = vadd.f32 0.0, %v397
        %v399 = vpop.f32.mrf.mxu0
        %400 = vmatprep.mubr.f32.mxu0 0.0
        %401 = vmatmul.mubr.f32.gmra.mxu0 %v229
        %v402 = vpop.f32.mrf.mxu0
        %v403 = vadd.f32 0.0, %v402
        %v404 = vpop.f32.mrf.mxu0
        %405 = vmatprep.mubr.f32.mxu0 0.0
        %406 = vmatmul.mubr.f32.gmra.mxu0 %v232
        %v407 = vpop.f32.mrf.mxu0
        %v408 = vadd.f32 0.0, %v407
        %v409 = vpop.f32.mrf.mxu0
        %410 = vmatprep.mubr.f32.mxu0 0.0
        %411 = vmatmul.mubr.f32.gmra.mxu0 %v235
        %v412 = vpop.f32.mrf.mxu0
        %v413 = vadd.f32 0.0, %v412
        %v414 = vpop.f32.mrf.mxu0
        %415 = vmatprep.mubr.f32.mxu0 0.0
        %416 = vmatmul.mubr.f32.gmra.mxu0 %v238
        %v417 = vpop.f32.mrf.mxu0
        %v418 = vadd.f32 0.0, %v417
        %v419 = vpop.f32.mrf.mxu0
        %420 = vmatprep.mubr.f32.mxu0 0.0
        %421 = vmatmul.mubr.f32.gmra.mxu0 %v241
        %v422 = vpop.f32.mrf.mxu0
        %v423 = vadd.f32 0.0, %v422
        %v424 = vpop.f32.mrf.mxu0
        %425 = vmatprep.mubr.f32.mxu0 0.0
        %426 = vmatmul.mubr.f32.gmra.mxu0 %v244
        %v427 = vpop.f32.mrf.mxu0
        %v428 = vadd.f32 0.0, %v427
        %v429 = vpop.f32.mrf.mxu0
        %430 = vmatprep.mubr.f32.mxu0 0.0
        %431 = vmatmul.mubr.f32.gmra.mxu0 %v247
        %v432 = vpop.f32.mrf.mxu0
        %v433 = vadd.f32 0.0, %v432
        %v434 = vpop.f32.mrf.mxu0
        %435 = vmatprep.mubr.f32.mxu0 0.0
        %436 = vmatmul.mubr.f32.gmra.mxu0 %v250
        %v437 = vpop.f32.mrf.mxu0
        %v438 = vadd.f32 0.0, %v437
        %v439 = vpop.f32.mrf.mxu0
        %440 = vmatprep.mubr.f32.mxu0 0.0
        %441 = vmatmul.mubr.f32.gmra.mxu0 %v253
        %v442 = vpop.f32.mrf.mxu0
        %v443 = vadd.f32 0.0, %v442
        %v444 = vpop.f32.mrf.mxu0
        %445 = vmatprep.mubr.f32.mxu0 0.0
        %446 = vmatmul.mubr.f32.gmra.mxu0 %v256
        %v447 = vpop.f32.mrf.mxu0
        %v448 = vadd.f32 0.0, %v447
        %v449 = vpop.f32.mrf.mxu0
        %450 = vmatprep.mubr.f32.mxu0 0.0
        %451 = vmatmul.mubr.f32.gmra.mxu0 %v259
        %v452 = vpop.f32.mrf.mxu0
        %v453 = vadd.f32 0.0, %v452
        %v454 = vpop.f32.mrf.mxu0
        %455 = vmatprep.mubr.f32.mxu0 0.0
        %456 = vmatmul.mubr.f32.gmra.mxu0 %v262
        %v457 = vpop.f32.mrf.mxu0
        %v458 = vadd.f32 0.0, %v457
        %v459 = vpop.f32.mrf.mxu0
        %460 = vmatprep.mubr.f32.mxu0 0.0
        %461 = vmatmul.mubr.f32.gmra.mxu0 %v265
        %v462 = vpop.f32.mrf.mxu0
        %v463 = vadd.f32 0.0, %v462
        %v464 = vpop.f32.mrf.mxu0
        %465 = vmatprep.mubr.f32.mxu0 0.0
        %466 = vmatmul.mubr.f32.gmra.mxu0 %v268
        %v467 = vpop.f32.mrf.mxu0
        %v468 = vadd.f32 0.0, %v467
        %v469 = vpop.f32.mrf.mxu0
        %470 = vmatprep.mubr.f32.mxu0 0.0
        %471 = vmatmul.mubr.f32.gmra.mxu0 %v271
        %v472 = vpop.f32.mrf.mxu0
        %v473 = vadd.f32 0.0, %v472
        %v474 = vpop.f32.mrf.mxu0
        %475 = vmatprep.mubr.f32.mxu0 0.0
        %476 = vmatmul.mubr.f32.gmra.mxu0 %v274
        %v477 = vpop.f32.mrf.mxu0
        %v478 = vadd.f32 0.0, %v477
        %v479 = vpop.f32.mrf.mxu0
        %480 = vmatprep.mubr.f32.mxu0 0.0
        %481 = vmatmul.mubr.f32.gmra.mxu0 %v277
        %v482 = vpop.f32.mrf.mxu0
        %v483 = vadd.f32 0.0, %v482
        %v484 = vpop.f32.mrf.mxu0
        %485 = vmatprep.mubr.f32.mxu0 0.0
        %486 = vmatmul.mubr.f32.gmra.mxu0 %v280
        %v487 = vpop.f32.mrf.mxu0
        %v488 = vadd.f32 0.0, %v487
        %v489 = vpop.f32.mrf.mxu0
        %490 = vmatprep.mubr.f32.mxu0 0.0
        %491 = vmatmul.mubr.f32.gmra.mxu0 %v283
        %v492 = vpop.f32.mrf.mxu0
        %v493 = vadd.f32 0.0, %v492
        %v494 = vpop.f32.mrf.mxu0
        %495 = vmatprep.mubr.f32.mxu0 0.0
        %496 = vmatmul.mubr.f32.gmra.mxu0 %v286
        %v497 = vpop.f32.mrf.mxu0
        %v498 = vadd.f32 0.0, %v497
        %v499 = vpop.f32.mrf.mxu0
        %500 = vmatprep.mubr.f32.mxu0 0.0
        %501 = vmatmul.mubr.f32.gmra.mxu0 %v289
        %v502 = vpop.f32.mrf.mxu0
        %v503 = vadd.f32 0.0, %v502
        %v504 = vpop.f32.mrf.mxu0
        %505 = vmatprep.mubr.f32.mxu0 0.0
        %506 = vmatmul.mubr.f32.gmra.mxu0 %v292
        %v507 = vpop.f32.mrf.mxu0
        %v508 = vadd.f32 0.0, %v507
        %v509 = vpop.f32.mrf.mxu0
        %510 = vmatprep.mubr.f32.mxu0 0.0
        %511 = vmatmul.mubr.f32.gmra.mxu0 %v295
        %v512 = vpop.f32.mrf.mxu0
        %v513 = vadd.f32 0.0, %v512
        %v514 = vpop.f32.mrf.mxu0
        %515 = vmatprep.mubr.f32.mxu0 0.0
        %516 = vmatmul.mubr.f32.gmra.mxu0 %v298
        %v517 = vpop.f32.mrf.mxu0
        %v518 = vadd.f32 0.0, %v517
        %v519 = vpop.f32.mrf.mxu0
        %520 = vmatprep.mubr.f32.mxu0 0.0
        %521 = vmatmul.mubr.f32.gmra.mxu0 %v301
        %v522 = vpop.f32.mrf.mxu0
        %v523 = vadd.f32 0.0, %v522
        %v524 = vpop.f32.mrf.mxu0
        %525 = vmatprep.mubr.f32.mxu0 0.0
        %526 = vmatmul.mubr.f32.gmra.mxu0 %v304
        %v527 = vpop.f32.mrf.mxu0
        %v528 = vadd.f32 0.0, %v527
        %v529 = vpop.f32.mrf.mxu0
        %530 = vdwg.mxu0
        %531 = vst.msk [vmem:[%s167] sm:$0xff] %vm209, %v373
        %532 = vst.msk [vmem:[%s167 + $0x8] sm:$0xff] %vm209, %v378
        %533 = vst.msk [vmem:[%s167 + $0x20] sm:$0xff] %vm209, %v383
        %534 = vst.msk [vmem:[%s167 + $0x28] sm:$0xff] %vm209, %v388
        %535 = vst.msk [vmem:[%s167 + $0x40] sm:$0xff] %vm209, %v393
        %536 = vst.msk [vmem:[%s167 + $0x48] sm:$0xff] %vm209, %v398
        %537 = vst.msk [vmem:[%s167 + $0x60] sm:$0xff] %vm209, %v403
        %538 = vst.msk [vmem:[%s167 + $0x68] sm:$0xff] %vm209, %v408
        %539 = vst.msk [vmem:[%s167 + $0x80] sm:$0xff] %vm209, %v413
        %540 = vst.msk [vmem:[%s167 + $0x88] sm:$0xff] %vm209, %v418
        %541 = vst.msk [vmem:[%s167 + $0xa0] sm:$0xff] %vm209, %v423
        %542 = vst.msk [vmem:[%s167 + $0xa8] sm:$0xff] %vm209, %v428
        %543 = vst.msk [vmem:[%s167 + $0xc0] sm:$0xff] %vm209, %v433
        %544 = vst.msk [vmem:[%s167 + $0xc8] sm:$0xff] %vm209, %v438
        %545 = vst.msk [vmem:[%s167 + $0xe0] sm:$0xff] %vm209, %v443
        %546 = vst.msk [vmem:[%s167 + $0xe8] sm:$0xff] %vm209, %v448
        %547 = vst.msk [vmem:[%s167 + $0x100] sm:$0xff] %vm209, %v453
        %548 = vst.msk [vmem:[%s167 + $0x108] sm:$0xff] %vm209, %v458
        %549 = vst.msk [vmem:[%s167 + $0x120] sm:$0xff] %vm209, %v463
        %550 = vst.msk [vmem:[%s167 + $0x128] sm:$0xff] %vm209, %v468
        %551 = vst.msk [vmem:[%s167 + $0x140] sm:$0xff] %vm209, %v473
        %552 = vst.msk [vmem:[%s167 + $0x148] sm:$0xff] %vm209, %v478
        %553 = vst.msk [vmem:[%s167 + $0x160] sm:$0xff] %vm209, %v483
        %554 = vst.msk [vmem:[%s167 + $0x168] sm:$0xff] %vm209, %v488
        %555 = vst.msk [vmem:[%s167 + $0x180] sm:$0xff] %vm209, %v493
        %556 = vst.msk [vmem:[%s167 + $0x188] sm:$0xff] %vm209, %v498
        %557 = vst.msk [vmem:[%s167 + $0x1a0] sm:$0xff] %vm209, %v503
        %558 = vst.msk [vmem:[%s167 + $0x1a8] sm:$0xff] %vm209, %v508
        %559 = vst.msk [vmem:[%s167 + $0x1c0] sm:$0xff] %vm209, %v513
        %560 = vst.msk [vmem:[%s167 + $0x1c8] sm:$0xff] %vm209, %v518
        %561 = vst.msk [vmem:[%s167 + $0x1e0] sm:$0xff] %vm209, %v523
        %562 = vst.msk [vmem:[%s167 + $0x1e8] sm:$0xff] %vm209, %v528
        %s563 = scalar_lea.vmem %s1, 64
        %v564 = vld [vmem:[%s563] sm:$0xff]
        %v565 = vld [vmem:[%s563 + $0x8] sm:$0xff]
        %v566 = vld [vmem:[%s563 + $0x10] sm:$0xff]
        %v567 = vld [vmem:[%s563 + $0x18] sm:$0xff]
        %v568 = vld [vmem:[%s563 + $0x20] sm:$0xff]
        %v569 = vld [vmem:[%s563 + $0x28] sm:$0xff]
        %v570 = vld [vmem:[%s563 + $0x30] sm:$0xff]
        %v571 = vld [vmem:[%s563 + $0x38] sm:$0xff]
        %572 = vmatprep.subr.mxu0 0.0
        %573 = vmatpush1.msra.mxu0 0.0
        %574 = vmatprep.subr.mxu0 0.0
        %575 = vmatpush1.msra.mxu0 0.0
        %576 = vmatprep.subr.mxu0 0.0
        %577 = vmatpush1.msra.mxu0 0.0
        %578 = vmatprep.subr.mxu0 0.0
        %579 = vmatpush1.msra.mxu0 0.0
        %580 = vmatprep.subr.mxu0 0.0
        %581 = vmatpush1.msra.mxu0 0.0
        %582 = vmatprep.subr.mxu0 0.0
        %583 = vmatpush1.msra.mxu0 0.0
        %584 = vmatprep.subr.mxu0 0.0
        %585 = vmatpush1.msra.mxu0 0.0
        %586 = vmatprep.subr.mxu0 0.0
        %587 = vmatpush1.msra.mxu0 0.0
        %588 = vmatprep.subr.mxu0 0.0
        %589 = vmatpush1.msra.mxu0 %v571
        %590 = vmatprep.subr.mxu0 0.0
        %591 = vmatpush1.msra.mxu0 %v570
        %592 = vmatprep.subr.mxu0 0.0
        %593 = vmatpush1.msra.mxu0 %v569
        %594 = vmatprep.subr.mxu0 0.0
        %595 = vmatpush1.msra.mxu0 %v568
        %596 = vmatprep.subr.mxu0 0.0
        %597 = vmatpush1.msra.mxu0 %v567
        %598 = vmatprep.subr.mxu0 0.0
        %599 = vmatpush1.msra.mxu0 %v566
        %600 = vmatprep.subr.mxu0 0.0
        %601 = vmatpush1.msra.mxu0 %v565
        %602 = vmatprep.subr.mxu0 0.0
        %603 = vmatpush1.msra.mxu0 %v564
        %604 = vmatprep.subr.mxu0 0.0
        %605 = vmatpush2.msra.mxu0 0.0
        %606 = vmatprep.subr.mxu0 0.0
        %607 = vmatpush2.msra.mxu0 0.0
        %608 = vmatprep.subr.mxu0 0.0
        %609 = vmatpush2.msra.mxu0 0.0
        %610 = vmatprep.subr.mxu0 0.0
        %611 = vmatpush2.msra.mxu0 0.0
        %612 = vmatprep.subr.mxu0 0.0
        %613 = vmatpush2.msra.mxu0 0.0
        %614 = vmatprep.subr.mxu0 0.0
        %615 = vmatpush2.msra.mxu0 0.0
        %616 = vmatprep.subr.mxu0 0.0
        %617 = vmatpush2.msra.mxu0 0.0
        %618 = vmatprep.subr.mxu0 0.0
        %619 = vmatpush2.msra.mxu0 0.0
        %620 = vmatprep.subr.mxu0 0.0
        %621 = vmatpush2.msra.mxu0 0.0
        %622 = vmatprep.subr.mxu0 0.0
        %623 = vmatpush2.msra.mxu0 0.0
        %624 = vmatprep.subr.mxu0 0.0
        %625 = vmatpush2.msra.mxu0 0.0
        %626 = vmatprep.subr.mxu0 0.0
        %627 = vmatpush2.msra.mxu0 0.0
        %628 = vmatprep.subr.mxu0 0.0
        %629 = vmatpush2.msra.mxu0 0.0
        %630 = vmatprep.subr.mxu0 0.0
        %631 = vmatpush2.msra.mxu0 0.0
        %632 = vmatprep.subr.mxu0 0.0
        %633 = vmatpush2.msra.mxu0 0.0
        %634 = vmatprep.subr.mxu0 0.0
        %635 = vmatpush2.msra.mxu0 0.0
        %636 = vmatprep.mubr.f32.mxu0 0.0
        %637 = vmatmul.mubr.f32.gmra.mxu0 %v211
        %v638 = vpop.f32.mrf.mxu0
        %v639 = vadd.f32 0.0, %v638
        %v640 = vpop.f32.mrf.mxu0
        %641 = vmatprep.mubr.f32.mxu0 0.0
        %642 = vmatmul.mubr.f32.gmra.mxu0 %v214
        %v643 = vpop.f32.mrf.mxu0
        %v644 = vadd.f32 0.0, %v643
        %v645 = vpop.f32.mrf.mxu0
        %646 = vmatprep.mubr.f32.mxu0 0.0
        %647 = vmatmul.mubr.f32.gmra.mxu0 %v217
        %v648 = vpop.f32.mrf.mxu0
        %v649 = vadd.f32 0.0, %v648
        %v650 = vpop.f32.mrf.mxu0
        %651 = vmatprep.mubr.f32.mxu0 0.0
        %652 = vmatmul.mubr.f32.gmra.mxu0 %v220
        %v653 = vpop.f32.mrf.mxu0
        %v654 = vadd.f32 0.0, %v653
        %v655 = vpop.f32.mrf.mxu0
        %656 = vmatprep.mubr.f32.mxu0 0.0
        %657 = vmatmul.mubr.f32.gmra.mxu0 %v223
        %v658 = vpop.f32.mrf.mxu0
        %v659 = vadd.f32 0.0, %v658
        %v660 = vpop.f32.mrf.mxu0
        %661 = vmatprep.mubr.f32.mxu0 0.0
        %662 = vmatmul.mubr.f32.gmra.mxu0 %v226
        %v663 = vpop.f32.mrf.mxu0
        %v664 = vadd.f32 0.0, %v663
        %v665 = vpop.f32.mrf.mxu0
        %666 = vmatprep.mubr.f32.mxu0 0.0
        %667 = vmatmul.mubr.f32.gmra.mxu0 %v229
        %v668 = vpop.f32.mrf.mxu0
        %v669 = vadd.f32 0.0, %v668
        %v670 = vpop.f32.mrf.mxu0
        %671 = vmatprep.mubr.f32.mxu0 0.0
        %672 = vmatmul.mubr.f32.gmra.mxu0 %v232
        %v673 = vpop.f32.mrf.mxu0
        %v674 = vadd.f32 0.0, %v673
        %v675 = vpop.f32.mrf.mxu0
        %676 = vmatprep.mubr.f32.mxu0 0.0
        %677 = vmatmul.mubr.f32.gmra.mxu0 %v235
        %v678 = vpop.f32.mrf.mxu0
        %v679 = vadd.f32 0.0, %v678
        %v680 = vpop.f32.mrf.mxu0
        %681 = vmatprep.mubr.f32.mxu0 0.0
        %682 = vmatmul.mubr.f32.gmra.mxu0 %v238
        %v683 = vpop.f32.mrf.mxu0
        %v684 = vadd.f32 0.0, %v683
        %v685 = vpop.f32.mrf.mxu0
        %686 = vmatprep.mubr.f32.mxu0 0.0
        %687 = vmatmul.mubr.f32.gmra.mxu0 %v241
        %v688 = vpop.f32.mrf.mxu0
        %v689 = vadd.f32 0.0, %v688
        %v690 = vpop.f32.mrf.mxu0
        %691 = vmatprep.mubr.f32.mxu0 0.0
        %692 = vmatmul.mubr.f32.gmra.mxu0 %v244
        %v693 = vpop.f32.mrf.mxu0
        %v694 = vadd.f32 0.0, %v693
        %v695 = vpop.f32.mrf.mxu0
        %696 = vmatprep.mubr.f32.mxu0 0.0
        %697 = vmatmul.mubr.f32.gmra.mxu0 %v247
        %v698 = vpop.f32.mrf.mxu0
        %v699 = vadd.f32 0.0, %v698
        %v700 = vpop.f32.mrf.mxu0
        %701 = vmatprep.mubr.f32.mxu0 0.0
        %702 = vmatmul.mubr.f32.gmra.mxu0 %v250
        %v703 = vpop.f32.mrf.mxu0
        %v704 = vadd.f32 0.0, %v703
        %v705 = vpop.f32.mrf.mxu0
        %706 = vmatprep.mubr.f32.mxu0 0.0
        %707 = vmatmul.mubr.f32.gmra.mxu0 %v253
        %v708 = vpop.f32.mrf.mxu0
        %v709 = vadd.f32 0.0, %v708
        %v710 = vpop.f32.mrf.mxu0
        %711 = vmatprep.mubr.f32.mxu0 0.0
        %712 = vmatmul.mubr.f32.gmra.mxu0 %v256
        %v713 = vpop.f32.mrf.mxu0
        %v714 = vadd.f32 0.0, %v713
        %v715 = vpop.f32.mrf.mxu0
        %716 = vmatprep.mubr.f32.mxu0 0.0
        %717 = vmatmul.mubr.f32.gmra.mxu0 %v259
        %v718 = vpop.f32.mrf.mxu0
        %v719 = vadd.f32 0.0, %v718
        %v720 = vpop.f32.mrf.mxu0
        %721 = vmatprep.mubr.f32.mxu0 0.0
        %722 = vmatmul.mubr.f32.gmra.mxu0 %v262
        %v723 = vpop.f32.mrf.mxu0
        %v724 = vadd.f32 0.0, %v723
        %v725 = vpop.f32.mrf.mxu0
        %726 = vmatprep.mubr.f32.mxu0 0.0
        %727 = vmatmul.mubr.f32.gmra.mxu0 %v265
        %v728 = vpop.f32.mrf.mxu0
        %v729 = vadd.f32 0.0, %v728
        %v730 = vpop.f32.mrf.mxu0
        %731 = vmatprep.mubr.f32.mxu0 0.0
        %732 = vmatmul.mubr.f32.gmra.mxu0 %v268
        %v733 = vpop.f32.mrf.mxu0
        %v734 = vadd.f32 0.0, %v733
        %v735 = vpop.f32.mrf.mxu0
        %736 = vmatprep.mubr.f32.mxu0 0.0
        %737 = vmatmul.mubr.f32.gmra.mxu0 %v271
        %v738 = vpop.f32.mrf.mxu0
        %v739 = vadd.f32 0.0, %v738
        %v740 = vpop.f32.mrf.mxu0
        %741 = vmatprep.mubr.f32.mxu0 0.0
        %742 = vmatmul.mubr.f32.gmra.mxu0 %v274
        %v743 = vpop.f32.mrf.mxu0
        %v744 = vadd.f32 0.0, %v743
        %v745 = vpop.f32.mrf.mxu0
        %746 = vmatprep.mubr.f32.mxu0 0.0
        %747 = vmatmul.mubr.f32.gmra.mxu0 %v277
        %v748 = vpop.f32.mrf.mxu0
        %v749 = vadd.f32 0.0, %v748
        %v750 = vpop.f32.mrf.mxu0
        %751 = vmatprep.mubr.f32.mxu0 0.0
        %752 = vmatmul.mubr.f32.gmra.mxu0 %v280
        %v753 = vpop.f32.mrf.mxu0
        %v754 = vadd.f32 0.0, %v753
        %v755 = vpop.f32.mrf.mxu0
        %756 = vmatprep.mubr.f32.mxu0 0.0
        %757 = vmatmul.mubr.f32.gmra.mxu0 %v283
        %v758 = vpop.f32.mrf.mxu0
        %v759 = vadd.f32 0.0, %v758
        %v760 = vpop.f32.mrf.mxu0
        %761 = vmatprep.mubr.f32.mxu0 0.0
        %762 = vmatmul.mubr.f32.gmra.mxu0 %v286
        %v763 = vpop.f32.mrf.mxu0
        %v764 = vadd.f32 0.0, %v763
        %v765 = vpop.f32.mrf.mxu0
        %766 = vmatprep.mubr.f32.mxu0 0.0
        %767 = vmatmul.mubr.f32.gmra.mxu0 %v289
        %v768 = vpop.f32.mrf.mxu0
        %v769 = vadd.f32 0.0, %v768
        %v770 = vpop.f32.mrf.mxu0
        %771 = vmatprep.mubr.f32.mxu0 0.0
        %772 = vmatmul.mubr.f32.gmra.mxu0 %v292
        %v773 = vpop.f32.mrf.mxu0
        %v774 = vadd.f32 0.0, %v773
        %v775 = vpop.f32.mrf.mxu0
        %776 = vmatprep.mubr.f32.mxu0 0.0
        %777 = vmatmul.mubr.f32.gmra.mxu0 %v295
        %v778 = vpop.f32.mrf.mxu0
        %v779 = vadd.f32 0.0, %v778
        %v780 = vpop.f32.mrf.mxu0
        %781 = vmatprep.mubr.f32.mxu0 0.0
        %782 = vmatmul.mubr.f32.gmra.mxu0 %v298
        %v783 = vpop.f32.mrf.mxu0
        %v784 = vadd.f32 0.0, %v783
        %v785 = vpop.f32.mrf.mxu0
        %786 = vmatprep.mubr.f32.mxu0 0.0
        %787 = vmatmul.mubr.f32.gmra.mxu0 %v301
        %v788 = vpop.f32.mrf.mxu0
        %v789 = vadd.f32 0.0, %v788
        %v790 = vpop.f32.mrf.mxu0
        %791 = vmatprep.mubr.f32.mxu0 0.0
        %792 = vmatmul.mubr.f32.gmra.mxu0 %v304
        %v793 = vpop.f32.mrf.mxu0
        %v794 = vadd.f32 0.0, %v793
        %v795 = vpop.f32.mrf.mxu0
        %796 = vdwg.mxu0
        %s797 = scalar_lea.vmem %s167, 16
        %798 = vst.msk [vmem:[%s797] sm:$0xff] %vm209, %v639
        %799 = vst.msk [vmem:[%s797 + $0x8] sm:$0xff] %vm209, %v644
        %800 = vst.msk [vmem:[%s797 + $0x20] sm:$0xff] %vm209, %v649
        %801 = vst.msk [vmem:[%s797 + $0x28] sm:$0xff] %vm209, %v654
        %802 = vst.msk [vmem:[%s797 + $0x40] sm:$0xff] %vm209, %v659
        %803 = vst.msk [vmem:[%s797 + $0x48] sm:$0xff] %vm209, %v664
        %804 = vst.msk [vmem:[%s797 + $0x60] sm:$0xff] %vm209, %v669
        %805 = vst.msk [vmem:[%s797 + $0x68] sm:$0xff] %vm209, %v674
        %806 = vst.msk [vmem:[%s797 + $0x80] sm:$0xff] %vm209, %v679
        %807 = vst.msk [vmem:[%s797 + $0x88] sm:$0xff] %vm209, %v684
        %808 = vst.msk [vmem:[%s797 + $0xa0] sm:$0xff] %vm209, %v689
        %809 = vst.msk [vmem:[%s797 + $0xa8] sm:$0xff] %vm209, %v694
        %810 = vst.msk [vmem:[%s797 + $0xc0] sm:$0xff] %vm209, %v699
        %811 = vst.msk [vmem:[%s797 + $0xc8] sm:$0xff] %vm209, %v704
        %812 = vst.msk [vmem:[%s797 + $0xe0] sm:$0xff] %vm209, %v709
        %813 = vst.msk [vmem:[%s797 + $0xe8] sm:$0xff] %vm209, %v714
        %814 = vst.msk [vmem:[%s797 + $0x100] sm:$0xff] %vm209, %v719
        %815 = vst.msk [vmem:[%s797 + $0x108] sm:$0xff] %vm209, %v724
        %816 = vst.msk [vmem:[%s797 + $0x120] sm:$0xff] %vm209, %v729
        %817 = vst.msk [vmem:[%s797 + $0x128] sm:$0xff] %vm209, %v734
        %818 = vst.msk [vmem:[%s797 + $0x140] sm:$0xff] %vm209, %v739
        %819 = vst.msk [vmem:[%s797 + $0x148] sm:$0xff] %vm209, %v744
        %820 = vst.msk [vmem:[%s797 + $0x160] sm:$0xff] %vm209, %v749
        %821 = vst.msk [vmem:[%s797 + $0x168] sm:$0xff] %vm209, %v754
        %822 = vst.msk [vmem:[%s797 + $0x180] sm:$0xff] %vm209, %v759
        %823 = vst.msk [vmem:[%s797 + $0x188] sm:$0xff] %vm209, %v764
        %824 = vst.msk [vmem:[%s797 + $0x1a0] sm:$0xff] %vm209, %v769
        %825 = vst.msk [vmem:[%s797 + $0x1a8] sm:$0xff] %vm209, %v774
        %826 = vst.msk [vmem:[%s797 + $0x1c0] sm:$0xff] %vm209, %v779
        %827 = vst.msk [vmem:[%s797 + $0x1c8] sm:$0xff] %vm209, %v784
        %828 = vst.msk [vmem:[%s797 + $0x1e0] sm:$0xff] %vm209, %v789
        %829 = vst.msk [vmem:[%s797 + $0x1e8] sm:$0xff] %vm209, %v794
        %s830 = smul.u32 16, %s16
        %p831 = scmp.lt.s32.totalorder %s830, 31
        %s832 = scalar_select %p831, %s830, 31
        %s833 = smul.addr %s832, 4
        %s834 = smul.addr %s833, 8
        %s835 = scalar_lea.vmem %s2, %s834
        // Predicated region
        $region33: #{patch_expand.1} parent=27 // pred_check
          %p836 = pneg %p81
        $region34: #{patch_expand.1} parent=27 // pred_check_branch
          %838 = sbr.rel (%p836) target = $region36
        $region35: #{patch_expand.1} parent=27 // pred_region
          %s839 = smul.u32 16, %s16
        $region36: #{patch_expand.1} parent=27 // pred_fallthru
          _
      $region28: #{patch_expand.1} parent=5 // pred_fallthru
        _
      %p840 = scmp.le.s32.totalorder 2, %s11
      // Predicated region
      $region37: #{patch_expand.1} parent=5 // pred_check
        %p841 = pneg %p840
      $region38: #{patch_expand.1} parent=5 // pred_check_branch
        %843 = sbr.rel (%p841) target = $region40
      $region39: #{patch_expand.1} parent=5 // pred_region
        %s844 = ssub.s32 %s11, 2
        // Predicated region
        $region41: #{patch_expand.1} parent=39 // pred_check
          %p845 = pneg %p87
        $region42: #{patch_expand.1} parent=39 // pred_check_branch
          %847 = sbr.rel (%p845) target = $region44
        $region43: #{patch_expand.1} parent=39 // pred_region
          %s848 = smul.u32 16, %s17
          %p849 = scmp.lt.s32.totalorder %s848, 31
          %s850 = scalar_select %p849, %s848, 31
          %s851 = smul.addr %s850, 4
          %s852 = smul.addr %s851, 8
          %s853 = scalar_lea.vmem %s2, %s852
        $region44: #{patch_expand.1} parent=39 // pred_fallthru
          _
      $region40: #{patch_expand.1} parent=5 // pred_fallthru
        _
    $region6: #{patch_expand.1} parent=1 // loop_footer
      %s15 = sadd.s32 1, %s11
    $region7: #{patch_expand.1} parent=1 // loop_footer_branch
      %10 = sbr.rel target = $region3
    $region8: #{patch_expand.1} parent=1 // loop_exit
      _
    %854 = vsyncpa [#allocation3], 1
    %s855 = scalar_lea.sflag [#allocation3], 1
    %856 = vsyncpa %s855, 1

</llo_original>
